<compile_context>
chip_gen: v6e
topology: v6e:2x2x1
jax: 0.10.0
libtpu: 0.0.40
codegen_flags: <defaults>
</compile_context>

<pallas_src>
import functools
import math

import jax
import jax.numpy as jnp
from jax import lax
from jax.experimental import pallas as pl
from jax.experimental.pallas import tpu as pltpu


def _flip_chunk_kernel(x_ref, p_ref, o_ref):
    """One (tile_h, chunk_lanes) uint8 block: reverse pixel order inside the chunk.

    Chunk-order mirroring is done by the input BlockSpec index_map; this body only
    applies the within-chunk lane permutation via an exact bf16 MXU matmul.
    """
    x = x_ref[...].astype(jnp.bfloat16)                        # u8 -> bf16, exact for 0..255
    y = jnp.dot(x, p_ref[...], preferred_element_type=jnp.float32)
    o_ref[...] = y.astype(jnp.uint8)                           # f32 -> u8, exact


def _pixel_reverse_perm(pix, cbytes):
    """(pix*cbytes)^2 bf16 0/1 matrix: out lane (pixel t, byte ch) <- in lane (pix-1-t, ch)."""
    lanes = pix * cbytes
    j = jnp.arange(lanes, dtype=jnp.int32)
    t, ch = j // cbytes, j % cbytes
    src = (pix - 1 - t) * cbytes + ch
    i = jnp.arange(lanes, dtype=jnp.int32)
    return (i[:, None] == src[None, :]).astype(jnp.bfloat16)


def _flip_w_pallas(img, max_block_bytes=1 << 20, min_grid_steps=8):
    """Unconditionally flip img (H, W, C) along W with a Pallas kernel (any dtype, bit-exact)."""
    H, W, C = img.shape
    dtype = img.dtype
    k = dtype.itemsize

    # ---- Byte view -----------------------------------------------------------
    # Lane permutations commute with the byte reinterpretation, so flipping the byte
    # image flips any dtype bit-exactly (no MXU rounding / f32-precision concerns).
    if dtype == jnp.uint8:
        bytes_img = img
    else:
        bytes_img = lax.bitcast_convert_type(img, jnp.uint8)    # (H,W,C) or (H,W,C,k)
        if k > 1:
            bytes_img = bytes_img.reshape(H, W, C * k)
    cb = C * k                                                  # bytes per pixel

    # ---- Chunking ------------------------------------------------------------
    # Chunk of `pix` pixels so pix*cb is a multiple of 128 lanes (aligned, unmasked
    # stores).  Keep chunks small (~384 lanes): MXU work is 2*chunk_lanes FLOP/byte,
    # while 384-byte contiguous DMA runs are still efficient.
    pix0 = 128 // math.gcd(cb, 128)                             # minimal lane-aligned chunk
    pix = pix0 * max(1, -(-384 // (pix0 * cb)))
    chunk_lanes = pix * cb

    # Left-pad W to a multiple of pix (costs only for odd widths); slice after the flip.
    pad = (-W) % pix
    Wp = W + pad
    if pad:
        bytes_img = jnp.pad(bytes_img, ((0, 0), (pad, 0), (0, 0)))
    n_chunks = Wp // pix

    x2 = bytes_img.reshape(H, Wp * cb)                          # free reshape (row-major HWC)
    pmat = _pixel_reverse_perm(pix, cb)

    # ---- Row-tile height -----------------------------------------------------
    # Big enough to amortize the ~0.35us per-grid-step overhead, small enough that
    # (a) the grid has >= min_grid_steps steps (pipelining + both v7x TCs get work) and
    # (b) one block stays <= max_block_bytes (block is uint8, so bytes == elements).
    cap_bytes = max(32, max_block_bytes // chunk_lanes)
    need_nh = -(-min_grid_steps // n_chunks)                    # ceil
    cap_split = -(-H // need_nh)                                # ceil
    tile_h = min(H, cap_bytes, cap_split)
    if tile_h < H:
        # 32-row multiples match the native (32,128) 8-bit tiling; tiny images use full H.
        tile_h = min(H, max(32, (tile_h // 32) * 32))
    n_h = pl.cdiv(H, tile_h)

    out2 = pl.pallas_call(
        _flip_chunk_kernel,
        out_shape=jax.ShapeDtypeStruct((H, Wp * cb), jnp.uint8),
        grid=(n_h, n_chunks),
        in_specs=[
            # Chunk mirroring lives here: output chunk j reads input chunk n_chunks-1-j.
            pl.BlockSpec((tile_h, chunk_lanes), lambda i, j: (i, n_chunks - 1 - j)),
            # Permutation matrix stays resident in VMEM (constant block index).
            pl.BlockSpec((chunk_lanes, chunk_lanes), lambda i, j: (0, 0)),
        ],
        out_specs=pl.BlockSpec((tile_h, chunk_lanes), lambda i, j: (i, j)),
        compiler_params=pltpu.CompilerParams(
            dimension_semantics=("parallel", "parallel"),       # v7x: both TCs split the grid
            vmem_limit_bytes=48 * 1024 * 1024,                  # headroom for f32/bf16 temps
        ),
    )(x2, pmat)

    out = out2.reshape(H, Wp, cb)[:, :W, :]                     # drop the (flipped) padding
    if dtype != jnp.uint8:
        if k > 1:
            out = lax.bitcast_convert_type(out.reshape(H, W, C, k), dtype)   # -> (H, W, C)
        else:
            out = lax.bitcast_convert_type(out, dtype)
    return out


@functools.partial(jax.jit, static_argnames=("max_block_bytes",))
def horizontal_flip_pallas(img, p, key, max_block_bytes=1 << 20):
    """Flip img (H, W, C) along W with probability p.  Returns (image, flip_flag)."""
    u = jax.random.uniform(key, (), dtype=jnp.float32)
    flip = u < p                                                # torch.rand(1) < self.p
    out = lax.cond(
        flip,
        lambda x: _flip_w_pallas(x, max_block_bytes),
        lambda x: x,   # no-flip path: donate `img` at the call site to make this copy-free
        img,
    )
    # TODO(synk): Image.fromarray(...) (PIL host-side conversion) has no Pallas
    # equivalent; we return the (maybe flipped) array and the flip flag instead.
    return out, flip


if __name__ == "__main__":
    key = jax.random.PRNGKey(0)
    k_img, k_rand = jax.random.split(key)

    ok = True

    # uint8 RGB image (the dtype np.array(PIL image) actually produces).
    H, W, C = 64, 128, 3
    img = jax.random.randint(k_img, (H, W, C), 0, 256, dtype=jnp.int32).astype(jnp.uint8)
    for p in (1.0, 0.0, 0.5):
        out, flipped = horizontal_flip_pallas(img, p, k_rand)
        out = jax.block_until_ready(out)
        ref = jnp.where(flipped, img[:, ::-1, :], img)
        ok &= (out.shape == img.shape and out.dtype == img.dtype
               and bool(jnp.all(out == ref)))

    # Odd width (96 px) exercises the pad+slice path; float32 exercises the byte-view
    # path (bit-exact, no MXU precision concerns).
    imgf = jax.random.uniform(k_img, (32, 96, 3), dtype=jnp.float32)
    outf, _ = horizontal_flip_pallas(imgf, 1.0, k_rand)
    outf = jax.block_until_ready(outf)
    ok &= bool(jnp.all(outf == imgf[:, ::-1, :]))

    # int32 with values far above 2^24: the byte view keeps the flip bit-exact.
    imgi = jax.random.randint(k_img, (16, 40, 3), -(2**31), 2**31 - 1, dtype=jnp.int32)
    outi, _ = horizontal_flip_pallas(imgi, 1.0, k_rand)
    outi = jax.block_until_ready(outi)
    ok &= bool(jnp.all(outi == imgi[:, ::-1, :]))

    print("KERNEL_OK" if ok else "KERNEL_MISMATCH")
</pallas_src>

<mosaic_0001>
module attributes {stable_mosaic.version = 11 : i64} {
  func.func @_flip_chunk_kernel(%arg0: i32, %arg1: i32, %arg2: memref<32x384xi8, #tpu.memory_space<vmem>>, %arg3: memref<384x384xbf16, #tpu.memory_space<vmem>>, %arg4: memref<32x384xi8, #tpu.memory_space<vmem>>) attributes {dimension_semantics = [#tpu.dimension_semantics<parallel>, #tpu.dimension_semantics<parallel>], iteration_bounds = array<i64: 2, 1>, scalar_prefetch = 0 : i64, scratch_operands = 0 : i64, tpu.core_type = #tpu.core_type<tc>, window_params = [{transform_indices = @transform_0, window_bounds = array<i64: 32, 384>}, {pipeline_mode = #tpu.pipeline_mode<synchronous>, transform_indices = @transform_1, window_bounds = array<i64: 384, 384>}, {transform_indices = @transform_2, window_bounds = array<i64: 32, 384>}]} {
    %c0 = arith.constant 0 : index
    %c0_0 = arith.constant 0 : index
    %0 = vector.load %arg2[%c0, %c0_0] : memref<32x384xi8, #tpu.memory_space<vmem>>, vector<32x384xi8>
    %1 = arith.uitofp %0 : vector<32x384xi8> to vector<32x384xbf16>
    %c0_1 = arith.constant 0 : index
    %c0_2 = arith.constant 0 : index
    %2 = vector.load %arg3[%c0_1, %c0_2] : memref<384x384xbf16, #tpu.memory_space<vmem>>, vector<384x384xbf16>
    %cst = arith.constant dense<0.000000e+00> : vector<32x384xf32>
    %3 = tpu.matmul %1, %2, %cst {dimension_numbers = #tpu.dot_dimension_numbers<[1], [0], [0], [1], [0, 0, 1, 1], [], []>} : vector<32x384xbf16>, vector<384x384xbf16>, vector<32x384xf32> -> vector<32x384xf32>
    %4 = arith.fptoui %3 : vector<32x384xf32> to vector<32x384xi8>
    %c0_3 = arith.constant 0 : index
    %c0_4 = arith.constant 0 : index
    %5 = vector.load %arg4[%c0_3, %c0_4] : memref<32x384xi8, #tpu.memory_space<vmem>>, vector<32x384xi8>
    tpu.vector_store %arg4[%c0_3, %c0_4], %4 {strides = array<i32>} : memref<32x384xi8, #tpu.memory_space<vmem>>, vector<32x384xi8>,
    return
  }
  func.func @transform_0(%arg0: i32, %arg1: i32) -> (i32, i32) {
    %c0_i32 = arith.constant 0 : i32
    %0 = arith.subi %c0_i32, %arg1 : i32
    %c0_i32_0 = arith.constant 0 : i32
    return %arg0, %0 : i32, i32
  }
  func.func @transform_1(%arg0: i32, %arg1: i32) -> (i32, i32) {
    %c0_i32 = arith.constant 0 : i32
    %c0_i32_0 = arith.constant 0 : i32
    %c0_i32_1 = arith.constant 0 : i32
    return %c0_i32, %c0_i32_0 : i32, i32
  }
  func.func @transform_2(%arg0: i32, %arg1: i32) -> (i32, i32) {
    %c0_i32 = arith.constant 0 : i32
    return %arg0, %arg1 : i32, i32
  }
}

</mosaic_0001>

<llo_original>
// kernel: branch_1_fun.1
$region0: #{branch_1_fun.1}
  #allocation0 [shape = 'u32[]', space=smem, size = 0x4, offset = 0x4, fixed_abs, tag = 'smem constant byte address 0x4 - core index']
  #allocation1 [shape = 'u32[144,128]{1,0:T(1,128)}', space=vmem, size = 0x12000, scoped, tag = 'internal scratch']
  %s0 = inlined_call_operand.vmem [shape: u8[64,384], index: 0, kind: input, shape index: {}]
  %s1 = inlined_call_operand.vmem [shape: bf16[384,384], index: 1, kind: input, shape index: {}]
  %s2 = inlined_call_operand.vmem [shape: u8[64,384], index: 2, kind: output, shape index: {}]
  %s3 = sld [smem:[#allocation0]]
  $region41: #{branch_1_fun.1} parent=0
    _
  %s5 = ssub.s32 1, %s3
  %s6 = scalar_select 0, %s5, %s3
  loop: start=0, step=1, limit=4
  $region2: #{branch_1_fun.1} parent=0 // loop_pre_header
    _
  $region3: #{branch_1_fun.1} parent=0 // loop_header
    %s8 = sphi 0, %s12
    %p9 = scmp.ge.s32.totalorder %s8, 4
    %s15 = sphi 0, %s27
    %s16 = sphi 0, %s23
    %s17 = sphi 0, %s15
    %s18 = sphi 0, %s16
    %s19 = sphi 0, %s17
    %s20 = sphi 0, %s18
    %s34 = sphi 0, %s36
    %s37 = sphi 0, %s34
    %s38 = sphi 0, %s37
    %s54 = sphi 0, %s38
    %s58 = sphi 0, %s58
    %s60 = sphi 0, %s58
    %s61 = sphi 0, %s60
    %s75 = sphi 0, %s61
    %s83 = sphi 0, %s85
    %s86 = sphi 0, %s83
    %s87 = sphi 0, %s86
    %s103 = sphi 0, %s87
  $region4: #{branch_1_fun.1} parent=0 // loop_header_branch
    %11 = sbr.rel (%p9) target = $region8
  $region5: #{branch_1_fun.1} parent=0 // loop_body
    %s13 = ssub.s32 %s8, 1
    %s14 = ssub.s32 %s8, 2
    %s21 = sadd.s32 1, %s16
    %p22 = scmp.ge.s32.totalorder %s21, 1
    %s23 = scalar_select %p22, 0, %s21
    %s24 = sadd.s32 1, %s15
    %s25 = scalar_select %p22, %s24, %s15
    %p26 = scmp.ge.s32.totalorder %s25, 2
    %s27 = scalar_select %p26, 0, %s25
    %s28 = ssub.s32 0, %s16
    %s29 = ssub.s32 0, %s23
    %s30 = ssub.s32 %s15, %s27
    %s31 = ssub.s32 %s28, %s29
    %s32 = sor.u32 %s30, %s31
    %p33 = scmp.eq.s32.totalorder %s32, 0
    %s35 = sadd.s32 %s34, 1
    %s36 = scalar_select %p33, %s34, %s35
    %p39 = pneg %p33
    %p40 = scmp.eq.s32.totalorder %s8, 1
    %p41 = por %p39, %p40
    %p42 = scmp.ne.s32.totalorder %s34, %s37
    %p43 = scmp.eq.s32.totalorder %s8, 0
    %p44 = por %p42, %p43
    %p45 = scmp.ne.s32.totalorder %s34, %s37
    %p46 = scmp.eq.s32.totalorder %s13, 1
    %p47 = por %p45, %p46
    %p48 = scmp.ne.s32.totalorder %s37, %s38
    %p49 = scmp.eq.s32.totalorder %s13, 0
    %p50 = por %p48, %p49
    %p51 = scmp.ne.s32.totalorder %s37, %s38
    %p52 = scmp.eq.s32.totalorder %s14, 1
    %p53 = por %p51, %p52
    %p55 = scmp.ne.s32.totalorder %s38, %s54
    %p56 = scmp.eq.s32.totalorder %s14, 0
    %p57 = por %p55, %p56
    %s59 = sadd.s32 %s58, 1
    %p62 = scmp.eq.s32.totalorder %s8, 1
    %p63 = scmp.ne.s32.totalorder %s58, %s60
    %p64 = scmp.eq.s32.totalorder %s8, 0
    %p65 = por %p63, %p64
    %p66 = scmp.ne.s32.totalorder %s58, %s60
    %p67 = scmp.eq.s32.totalorder %s13, 1
    %p68 = por %p66, %p67
    %p69 = scmp.ne.s32.totalorder %s60, %s61
    %p70 = scmp.eq.s32.totalorder %s13, 0
    %p71 = por %p69, %p70
    %p72 = scmp.ne.s32.totalorder %s60, %s61
    %p73 = scmp.eq.s32.totalorder %s14, 1
    %p74 = por %p72, %p73
    %p76 = scmp.ne.s32.totalorder %s61, %s75
    %p77 = scmp.eq.s32.totalorder %s14, 0
    %p78 = por %p76, %p77
    %s79 = ssub.s32 %s15, %s27
    %s80 = ssub.s32 %s16, %s23
    %s81 = sor.u32 %s79, %s80
    %p82 = scmp.eq.s32.totalorder %s81, 0
    %s84 = sadd.s32 %s83, 1
    %s85 = scalar_select %p82, %s83, %s84
    %p88 = pneg %p82
    %p89 = scmp.eq.s32.totalorder %s8, 1
    %p90 = por %p88, %p89
    %p91 = scmp.ne.s32.totalorder %s83, %s86
    %p92 = scmp.eq.s32.totalorder %s8, 0
    %p93 = por %p91, %p92
    %p94 = scmp.ne.s32.totalorder %s83, %s86
    %p95 = scmp.eq.s32.totalorder %s13, 1
    %p96 = por %p94, %p95
    %p97 = scmp.ne.s32.totalorder %s86, %s87
    %p98 = scmp.eq.s32.totalorder %s13, 0
    %p99 = por %p97, %p98
    %p100 = scmp.ne.s32.totalorder %s86, %s87
    %p101 = scmp.eq.s32.totalorder %s14, 1
    %p102 = por %p100, %p101
    %p104 = scmp.ne.s32.totalorder %s87, %s103
    %p105 = scmp.eq.s32.totalorder %s14, 0
    %p106 = por %p104, %p105
    %p107 = scmp.le.s32.totalorder 1, %s8
    %p108 = scmp.lt.s32.totalorder %s8, 3
    %p109 = pnand %p107, %p108
    %p110 = pneg %p109
    // Predicated region
    $region9: #{branch_1_fun.1} parent=5 // pred_check
      _
    $region10: #{branch_1_fun.1} parent=5 // pred_check_branch
      %112 = sbr.rel (%p109) target = $region12
    $region11: #{branch_1_fun.1} parent=5 // pred_region
      %s113 = ssub.s32 %s8, 1
      // Predicated region
      $region13: #{branch_1_fun.1} parent=11 // pred_check
        %p114 = pneg %p71
      $region14: #{branch_1_fun.1} parent=11 // pred_check_branch
        %116 = sbr.rel (%p114) target = $region16
      $region15: #{branch_1_fun.1} parent=11 // pred_region
        _
      $region16: #{branch_1_fun.1} parent=11 // pred_fallthru
        _
    $region12: #{branch_1_fun.1} parent=5 // pred_fallthru
      _
    %p117 = scmp.lt.s32.totalorder %s8, 2
    // Predicated region
    $region17: #{branch_1_fun.1} parent=5 // pred_check
      %p118 = pneg %p117
    $region18: #{branch_1_fun.1} parent=5 // pred_check_branch
      %120 = sbr.rel (%p118) target = $region20
    $region19: #{branch_1_fun.1} parent=5 // pred_region
      // Predicated region
      $region21: #{branch_1_fun.1} parent=19 // pred_check
        %p121 = pneg %p44
      $region22: #{branch_1_fun.1} parent=19 // pred_check_branch
        %123 = sbr.rel (%p121) target = $region24
      $region23: #{branch_1_fun.1} parent=19 // pred_region
        %s124 = ssub.s32 0, %s16
        %s125 = smul.u32 3, %s124
        %p126 = scmp.lt.s32.totalorder %s15, 1
        %s127 = scalar_select %p126, %s15, 1
        %p128 = scmp.lt.s32.totalorder %s125, 2
        %s129 = scalar_select %p128, %s125, 2
        %s130 = smul.addr %s127, 3
        %s131 = sadd.s32 %s129, %s130
        %s132 = smul.addr %s131, 8
        %s133 = scalar_lea.vmem %s0, %s132
        %s134 = ssub.s32 0, %s16
        %s135 = smul.u32 3, %s134
      $region24: #{branch_1_fun.1} parent=19 // pred_fallthru
        _
    $region20: #{branch_1_fun.1} parent=5 // pred_fallthru
      _
    %p136 = scmp.le.s32.totalorder 1, %s8
    %p137 = scmp.lt.s32.totalorder %s8, 3
    %p138 = pnand %p136, %p137
    %p139 = pneg %p138
    // Predicated region
    $region25: #{branch_1_fun.1} parent=5 // pred_check
      _
    $region26: #{branch_1_fun.1} parent=5 // pred_check_branch
      %141 = sbr.rel (%p138) target = $region28
    $region27: #{branch_1_fun.1} parent=5 // pred_region
      %s142 = ssub.s32 %s8, 1
      %s143 = ssub.s32 0, %s18
      %s144 = smul.u32 3, %s143
      %p145 = scmp.lt.s32.totalorder %s17, 1
      %s146 = scalar_select %p145, %s17, 1
      %p147 = scmp.lt.s32.totalorder %s144, 2
      %s148 = scalar_select %p147, %s144, 2
      %s149 = smul.addr %s146, 3
      %s150 = sadd.s32 %s148, %s149
      %s151 = smul.addr %s150, 8
      %s152 = scalar_lea.vmem %s0, %s151
      %p153 = pneg %p50
      %p154 = pneg %p47
      %p155 = pneg %p71
      %p156 = pneg %p68
      %p157 = pneg %p99
      %p158 = pneg %p96
      %s159 = smul.u32 4, %s17
      %s160 = smul.u32 3, %s18
      %p161 = scmp.lt.s32.totalorder %s159, 7
      %s162 = scalar_select %p161, %s159, 7
      %p163 = scmp.lt.s32.totalorder %s160, 2
      %s164 = scalar_select %p163, %s160, 2
      %s165 = smul.addr %s162, 3
      %s166 = sadd.s32 %s164, %s165
      %s167 = smul.addr %s166, 2
      %s168 = scalar_lea.vmem %s2, %s167
      %s169 = ssub.s32 0, %s18
      %s170 = smul.u32 3, %s169
      %p171 = scmp.lt.s32.totalorder %s17, 1
      %s172 = scalar_select %p171, %s17, 1
      %p173 = scmp.lt.s32.totalorder %s170, 2
      %s174 = scalar_select %p173, %s170, 2
      %s175 = smul.addr %s172, 3
      %s176 = sadd.s32 %s174, %s175
      %s177 = smul.addr %s176, 8
      %s178 = scalar_lea.vmem %s0, %s177
      %s179 = ssub.s32 0, %s18
      %s180 = smul.u32 3, %s179
      %s181 = smul.u32 4, %s17
      %s182 = smul.u32 3, %s18
      %p183 = scmp.lt.s32.totalorder %s181, 7
      %s184 = scalar_select %p183, %s181, 7
      %p185 = scmp.lt.s32.totalorder %s182, 2
      %s186 = scalar_select %p185, %s182, 2
      %s187 = smul.addr %s184, 3
      %s188 = sadd.s32 %s186, %s187
      %s189 = smul.addr %s188, 2
      %s190 = scalar_lea.vmem %s2, %s189
      %s191 = smul.u32 4, %s17
      %s192 = smul.u32 3, %s18
      %v194 = vld [vmem:[%s178] sm:$0xff]
      %v195 = vld [vmem:[%s178 + $0x8] sm:$0xff]
      %v196 = vld [vmem:[%s178 + $0x10] sm:$0xff]
      %v197 = vunpack.c.l.u8.bf16 %v194
      %v198 = vunpack.c.l.u8.bf16 %v195
      %v199 = vunpack.c.l.u8.bf16 %v196
      %v200 = vunpack.c.h.u8.bf16 %v194
      %v201 = vunpack.c.h.u8.bf16 %v195
      %v202 = vunpack.c.h.u8.bf16 %v196
      %v203 = vld [vmem:[%s1] sm:$0xff]
      %v204 = vld [vmem:[%s1 + $0x8] sm:$0xf]
      %v205 = vld [vmem:[%s1 + $0xc] sm:$0xff]
      %v206 = vld [vmem:[%s1 + $0x14] sm:$0xf]
      %v207 = vld [vmem:[%s1 + $0x18] sm:$0xff]
      %v208 = vld [vmem:[%s1 + $0x20] sm:$0xf]
      %v209 = vld [vmem:[%s1 + $0x24] sm:$0xff]
      %v210 = vld [vmem:[%s1 + $0x2c] sm:$0xf]
      %v211 = vld [vmem:[%s1 + $0x30] sm:$0xff]
      %v212 = vld [vmem:[%s1 + $0x38] sm:$0xf]
      %v213 = vld [vmem:[%s1 + $0x3c] sm:$0xff]
      %v214 = vld [vmem:[%s1 + $0x44] sm:$0xf]
      %v215 = vld [vmem:[%s1 + $0x48] sm:$0xff]
      %v216 = vld [vmem:[%s1 + $0x50] sm:$0xf]
      %v217 = vld [vmem:[%s1 + $0x54] sm:$0xff]
      %v218 = vld [vmem:[%s1 + $0x5c] sm:$0xf]
      %v219 = vld [vmem:[%s1 + $0x60] sm:$0xff]
      %v220 = vld [vmem:[%s1 + $0x68] sm:$0xf]
      %v221 = vld [vmem:[%s1 + $0x6c] sm:$0xff]
      %v222 = vld [vmem:[%s1 + $0x74] sm:$0xf]
      %v223 = vld [vmem:[%s1 + $0x78] sm:$0xff]
      %v224 = vld [vmem:[%s1 + $0x80] sm:$0xf]
      %v225 = vld [vmem:[%s1 + $0x84] sm:$0xff]
      %v226 = vld [vmem:[%s1 + $0x8c] sm:$0xf]
      %v227 = vld [vmem:[%s1 + $0x90] sm:$0xff]
      %v228 = vld [vmem:[%s1 + $0x98] sm:$0xf]
      %v229 = vld [vmem:[%s1 + $0x9c] sm:$0xff]
      %v230 = vld [vmem:[%s1 + $0xa4] sm:$0xf]
      %v231 = vld [vmem:[%s1 + $0xa8] sm:$0xff]
      %v232 = vld [vmem:[%s1 + $0xb0] sm:$0xf]
      %v233 = vld [vmem:[%s1 + $0xb4] sm:$0xff]
      %v234 = vld [vmem:[%s1 + $0xbc] sm:$0xf]
      %v235 = vld [vmem:[%s1 + $0xc0] sm:$0xff]
      %v236 = vld [vmem:[%s1 + $0xc8] sm:$0xf]
      %v237 = vld [vmem:[%s1 + $0xcc] sm:$0xff]
      %v238 = vld [vmem:[%s1 + $0xd4] sm:$0xf]
      %v239 = vld [vmem:[%s1 + $0xd8] sm:$0xff]
      %v240 = vld [vmem:[%s1 + $0xe0] sm:$0xf]
      %v241 = vld [vmem:[%s1 + $0xe4] sm:$0xff]
      %v242 = vld [vmem:[%s1 + $0xec] sm:$0xf]
      %v243 = vld [vmem:[%s1 + $0xf0] sm:$0xff]
      %v244 = vld [vmem:[%s1 + $0xf8] sm:$0xf]
      %v245 = vld [vmem:[%s1 + $0xfc] sm:$0xff]
      %v246 = vld [vmem:[%s1 + $0x104] sm:$0xf]
      %v247 = vld [vmem:[%s1 + $0x108] sm:$0xff]
      %v248 = vld [vmem:[%s1 + $0x110] sm:$0xf]
      %v249 = vld [vmem:[%s1 + $0x114] sm:$0xff]
      %v250 = vld [vmem:[%s1 + $0x11c] sm:$0xf]
      %v251 = vld [vmem:[%s1 + $0x120] sm:$0xff]
      %v252 = vld [vmem:[%s1 + $0x128] sm:$0xf]
      %v253 = vld [vmem:[%s1 + $0x12c] sm:$0xff]
      %v254 = vld [vmem:[%s1 + $0x134] sm:$0xf]
      %v255 = vld [vmem:[%s1 + $0x138] sm:$0xff]
      %v256 = vld [vmem:[%s1 + $0x140] sm:$0xf]
      %v257 = vld [vmem:[%s1 + $0x144] sm:$0xff]
      %v258 = vld [vmem:[%s1 + $0x14c] sm:$0xf]
      %v259 = vld [vmem:[%s1 + $0x150] sm:$0xff]
      %v260 = vld [vmem:[%s1 + $0x158] sm:$0xf]
      %v261 = vld [vmem:[%s1 + $0x15c] sm:$0xff]
      %v262 = vld [vmem:[%s1 + $0x164] sm:$0xf]
      %v263 = vld [vmem:[%s1 + $0x168] sm:$0xff]
      %v264 = vld [vmem:[%s1 + $0x170] sm:$0xf]
      %v265 = vld [vmem:[%s1 + $0x174] sm:$0xff]
      %v266 = vld [vmem:[%s1 + $0x17c] sm:$0xf]
      %v267 = vld [vmem:[%s1 + $0x180] sm:$0xff]
      %v268 = vld [vmem:[%s1 + $0x188] sm:$0xf]
      %v269 = vld [vmem:[%s1 + $0x18c] sm:$0xff]
      %v270 = vld [vmem:[%s1 + $0x194] sm:$0xf]
      %v271 = vld [vmem:[%s1 + $0x198] sm:$0xff]
      %v272 = vld [vmem:[%s1 + $0x1a0] sm:$0xf]
      %v273 = vld [vmem:[%s1 + $0x1a4] sm:$0xff]
      %v274 = vld [vmem:[%s1 + $0x1ac] sm:$0xf]
      %v275 = vld [vmem:[%s1 + $0x1b0] sm:$0xff]
      %v276 = vld [vmem:[%s1 + $0x1b8] sm:$0xf]
      %v277 = vld [vmem:[%s1 + $0x1bc] sm:$0xff]
      %v278 = vld [vmem:[%s1 + $0x1c4] sm:$0xf]
      %v279 = vld [vmem:[%s1 + $0x1c8] sm:$0xff]
      %v280 = vld [vmem:[%s1 + $0x1d0] sm:$0xf]
      %v281 = vld [vmem:[%s1 + $0x1d4] sm:$0xff]
      %v282 = vld [vmem:[%s1 + $0x1dc] sm:$0xf]
      %v283 = vld [vmem:[%s1 + $0x1e0] sm:$0xff]
      %v284 = vld [vmem:[%s1 + $0x1e8] sm:$0xf]
      %v285 = vld [vmem:[%s1 + $0x1ec] sm:$0xff]
      %v286 = vld [vmem:[%s1 + $0x1f4] sm:$0xf]
      %v287 = vld [vmem:[%s1 + $0x1f8] sm:$0xff]
      %v288 = vld [vmem:[%s1 + $0x200] sm:$0xf]
      %v289 = vld [vmem:[%s1 + $0x204] sm:$0xff]
      %v290 = vld [vmem:[%s1 + $0x20c] sm:$0xf]
      %v291 = vld [vmem:[%s1 + $0x210] sm:$0xff]
      %v292 = vld [vmem:[%s1 + $0x218] sm:$0xf]
      %v293 = vld [vmem:[%s1 + $0x21c] sm:$0xff]
      %v294 = vld [vmem:[%s1 + $0x224] sm:$0xf]
      %v295 = vld [vmem:[%s1 + $0x228] sm:$0xff]
      %v296 = vld [vmem:[%s1 + $0x230] sm:$0xf]
      %v297 = vld [vmem:[%s1 + $0x234] sm:$0xff]
      %v298 = vld [vmem:[%s1 + $0x23c] sm:$0xf]
      %v395 = vunpack.c.l.b16 %v203
      %v396 = vunpack.c.h.b16 %v203
      %v397 = vunpack.c.l.b16 %v204
      %v398 = vunpack.c.l.b16 %v205
      %v399 = vunpack.c.h.b16 %v205
      %v400 = vunpack.c.l.b16 %v206
      %v401 = vunpack.c.l.b16 %v207
      %v402 = vunpack.c.h.b16 %v207
      %v403 = vunpack.c.l.b16 %v208
      %v404 = vunpack.c.l.b16 %v209
      %v405 = vunpack.c.h.b16 %v209
      %v406 = vunpack.c.l.b16 %v210
      %v407 = vunpack.c.l.b16 %v211
      %v408 = vunpack.c.h.b16 %v211
      %v409 = vunpack.c.l.b16 %v212
      %v410 = vunpack.c.l.b16 %v213
      %v411 = vunpack.c.h.b16 %v213
      %v412 = vunpack.c.l.b16 %v214
      %v413 = vunpack.c.l.b16 %v215
      %v414 = vunpack.c.h.b16 %v215
      %v415 = vunpack.c.l.b16 %v216
      %v416 = vunpack.c.l.b16 %v217
      %v417 = vunpack.c.h.b16 %v217
      %v418 = vunpack.c.l.b16 %v218
      %v419 = vunpack.c.l.b16 %v219
      %v420 = vunpack.c.h.b16 %v219
      %v421 = vunpack.c.l.b16 %v220
      %v422 = vunpack.c.l.b16 %v221
      %v423 = vunpack.c.h.b16 %v221
      %v424 = vunpack.c.l.b16 %v222
      %v425 = vunpack.c.l.b16 %v223
      %v426 = vunpack.c.h.b16 %v223
      %v427 = vunpack.c.l.b16 %v224
      %v428 = vunpack.c.l.b16 %v225
      %v429 = vunpack.c.h.b16 %v225
      %v430 = vunpack.c.l.b16 %v226
      %v431 = vunpack.c.l.b16 %v227
      %v432 = vunpack.c.h.b16 %v227
      %v433 = vunpack.c.l.b16 %v228
      %v434 = vunpack.c.l.b16 %v229
      %v435 = vunpack.c.h.b16 %v229
      %v436 = vunpack.c.l.b16 %v230
      %v437 = vunpack.c.l.b16 %v231
      %v438 = vunpack.c.h.b16 %v231
      %v439 = vunpack.c.l.b16 %v232
      %v440 = vunpack.c.l.b16 %v233
      %v441 = vunpack.c.h.b16 %v233
      %v442 = vunpack.c.l.b16 %v234
      %v443 = vunpack.c.l.b16 %v235
      %v444 = vunpack.c.h.b16 %v235
      %v445 = vunpack.c.l.b16 %v236
      %v446 = vunpack.c.l.b16 %v237
      %v447 = vunpack.c.h.b16 %v237
      %v448 = vunpack.c.l.b16 %v238
      %v449 = vunpack.c.l.b16 %v239
      %v450 = vunpack.c.h.b16 %v239
      %v451 = vunpack.c.l.b16 %v240
      %v452 = vunpack.c.l.b16 %v241
      %v453 = vunpack.c.h.b16 %v241
      %v454 = vunpack.c.l.b16 %v242
      %v455 = vunpack.c.l.b16 %v243
      %v456 = vunpack.c.h.b16 %v243
      %v457 = vunpack.c.l.b16 %v244
      %v458 = vunpack.c.l.b16 %v245
      %v459 = vunpack.c.h.b16 %v245
      %v460 = vunpack.c.l.b16 %v246
      %v461 = vunpack.c.l.b16 %v247
      %v462 = vunpack.c.h.b16 %v247
      %v463 = vunpack.c.l.b16 %v248
      %v464 = vunpack.c.l.b16 %v249
      %v465 = vunpack.c.h.b16 %v249
      %v466 = vunpack.c.l.b16 %v250
      %v467 = vunpack.c.l.b16 %v251
      %v468 = vunpack.c.h.b16 %v251
      %v469 = vunpack.c.l.b16 %v252
      %v470 = vunpack.c.l.b16 %v253
      %v471 = vunpack.c.h.b16 %v253
      %v472 = vunpack.c.l.b16 %v254
      %v473 = vunpack.c.l.b16 %v255
      %v474 = vunpack.c.h.b16 %v255
      %v475 = vunpack.c.l.b16 %v256
      %v476 = vunpack.c.l.b16 %v257
      %v477 = vunpack.c.h.b16 %v257
      %v478 = vunpack.c.l.b16 %v258
      %v479 = vunpack.c.l.b16 %v259
      %v480 = vunpack.c.h.b16 %v259
      %v481 = vunpack.c.l.b16 %v260
      %v482 = vunpack.c.l.b16 %v261
      %v483 = vunpack.c.h.b16 %v261
      %v484 = vunpack.c.l.b16 %v262
      %v485 = vunpack.c.l.b16 %v263
      %v486 = vunpack.c.h.b16 %v263
      %v487 = vunpack.c.l.b16 %v264
      %v488 = vunpack.c.l.b16 %v265
      %v489 = vunpack.c.h.b16 %v265
      %v490 = vunpack.c.l.b16 %v266
      %v491 = vunpack.c.l.b16 %v267
      %v492 = vunpack.c.h.b16 %v267
      %v493 = vunpack.c.l.b16 %v268
      %v494 = vunpack.c.l.b16 %v269
      %v495 = vunpack.c.h.b16 %v269
      %v496 = vunpack.c.l.b16 %v270
      %v497 = vunpack.c.l.b16 %v271
      %v498 = vunpack.c.h.b16 %v271
      %v499 = vunpack.c.l.b16 %v272
      %v500 = vunpack.c.l.b16 %v273
      %v501 = vunpack.c.h.b16 %v273
      %v502 = vunpack.c.l.b16 %v274
      %v503 = vunpack.c.l.b16 %v275
      %v504 = vunpack.c.h.b16 %v275
      %v505 = vunpack.c.l.b16 %v276
      %v506 = vunpack.c.l.b16 %v277
      %v507 = vunpack.c.h.b16 %v277
      %v508 = vunpack.c.l.b16 %v278
      %v509 = vunpack.c.l.b16 %v279
      %v510 = vunpack.c.h.b16 %v279
      %v511 = vunpack.c.l.b16 %v280
      %v512 = vunpack.c.l.b16 %v281
      %v513 = vunpack.c.h.b16 %v281
      %v514 = vunpack.c.l.b16 %v282
      %v515 = vunpack.c.l.b16 %v283
      %v516 = vunpack.c.h.b16 %v283
      %v517 = vunpack.c.l.b16 %v284
      %v518 = vunpack.c.l.b16 %v285
      %v519 = vunpack.c.h.b16 %v285
      %v520 = vunpack.c.l.b16 %v286
      %v521 = vunpack.c.l.b16 %v287
      %v522 = vunpack.c.h.b16 %v287
      %v523 = vunpack.c.l.b16 %v288
      %v524 = vunpack.c.l.b16 %v289
      %v525 = vunpack.c.h.b16 %v289
      %v526 = vunpack.c.l.b16 %v290
      %v527 = vunpack.c.l.b16 %v291
      %v528 = vunpack.c.h.b16 %v291
      %v529 = vunpack.c.l.b16 %v292
      %v530 = vunpack.c.l.b16 %v293
      %v531 = vunpack.c.h.b16 %v293
      %v532 = vunpack.c.l.b16 %v294
      %v533 = vunpack.c.l.b16 %v295
      %v534 = vunpack.c.h.b16 %v295
      %v535 = vunpack.c.l.b16 %v296
      %v536 = vunpack.c.l.b16 %v297
      %v537 = vunpack.c.h.b16 %v297
      %v538 = vunpack.c.l.b16 %v298
      %v539 = vpack.c.b16 %v398, %v395
      %v540 = vpack.c.b16 %v399, %v396
      %v541 = vpack.c.b16 %v400, %v397
      %v542 = vpack.c.b16 %v404, %v401
      %v543 = vpack.c.b16 %v405, %v402
      %v544 = vpack.c.b16 %v406, %v403
      %v545 = vpack.c.b16 %v410, %v407
      %v546 = vpack.c.b16 %v411, %v408
      %v547 = vpack.c.b16 %v412, %v409
      %v548 = vpack.c.b16 %v416, %v413
      %v549 = vpack.c.b16 %v417, %v414
      %v550 = vpack.c.b16 %v418, %v415
      %v551 = vpack.c.b16 %v422, %v419
      %v552 = vpack.c.b16 %v423, %v420
      %v553 = vpack.c.b16 %v424, %v421
      %v554 = vpack.c.b16 %v428, %v425
      %v555 = vpack.c.b16 %v429, %v426
      %v556 = vpack.c.b16 %v430, %v427
      %v557 = vpack.c.b16 %v434, %v431
      %v558 = vpack.c.b16 %v435, %v432
      %v559 = vpack.c.b16 %v436, %v433
      %v560 = vpack.c.b16 %v440, %v437
      %v561 = vpack.c.b16 %v441, %v438
      %v562 = vpack.c.b16 %v442, %v439
      %v563 = vpack.c.b16 %v446, %v443
      %v564 = vpack.c.b16 %v447, %v444
      %v565 = vpack.c.b16 %v448, %v445
      %v566 = vpack.c.b16 %v452, %v449
      %v567 = vpack.c.b16 %v453, %v450
      %v568 = vpack.c.b16 %v454, %v451
      %v569 = vpack.c.b16 %v458, %v455
      %v570 = vpack.c.b16 %v459, %v456
      %v571 = vpack.c.b16 %v460, %v457
      %v572 = vpack.c.b16 %v464, %v461
      %v573 = vpack.c.b16 %v465, %v462
      %v574 = vpack.c.b16 %v466, %v463
      %v575 = vpack.c.b16 %v470, %v467
      %v576 = vpack.c.b16 %v471, %v468
      %v577 = vpack.c.b16 %v472, %v469
      %v578 = vpack.c.b16 %v476, %v473
      %v579 = vpack.c.b16 %v477, %v474
      %v580 = vpack.c.b16 %v478, %v475
      %v581 = vpack.c.b16 %v482, %v479
      %v582 = vpack.c.b16 %v483, %v480
      %v583 = vpack.c.b16 %v484, %v481
      %v584 = vpack.c.b16 %v488, %v485
      %v585 = vpack.c.b16 %v489, %v486
      %v586 = vpack.c.b16 %v490, %v487
      %v587 = vpack.c.b16 %v494, %v491
      %v588 = vpack.c.b16 %v495, %v492
      %v589 = vpack.c.b16 %v496, %v493
      %v590 = vpack.c.b16 %v500, %v497
      %v591 = vpack.c.b16 %v501, %v498
      %v592 = vpack.c.b16 %v502, %v499
      %v593 = vpack.c.b16 %v506, %v503
      %v594 = vpack.c.b16 %v507, %v504
      %v595 = vpack.c.b16 %v508, %v505
      %v596 = vpack.c.b16 %v512, %v509
      %v597 = vpack.c.b16 %v513, %v510
      %v598 = vpack.c.b16 %v514, %v511
      %v599 = vpack.c.b16 %v518, %v515
      %v600 = vpack.c.b16 %v519, %v516
      %v601 = vpack.c.b16 %v520, %v517
      %v602 = vpack.c.b16 %v524, %v521
      %v603 = vpack.c.b16 %v525, %v522
      %v604 = vpack.c.b16 %v526, %v523
      %v605 = vpack.c.b16 %v530, %v527
      %v606 = vpack.c.b16 %v531, %v528
      %v607 = vpack.c.b16 %v532, %v529
      %v608 = vpack.c.b16 %v536, %v533
      %v609 = vpack.c.b16 %v537, %v534
      %v610 = vpack.c.b16 %v538, %v535
      %683 = vmatprep.subr.bf16.mxu0 %v561
      %684 = vmatpush1.bf16.msra.mxu0 %v560
      %685 = vmatprep.subr.bf16.mxu0 %v558
      %686 = vmatpush1.bf16.msra.mxu0 %v557
      %687 = vmatprep.subr.bf16.mxu0 %v555
      %688 = vmatpush1.bf16.msra.mxu0 %v554
      %689 = vmatprep.subr.bf16.mxu0 %v552
      %690 = vmatpush1.bf16.msra.mxu0 %v551
      %691 = vmatprep.subr.bf16.mxu0 %v549
      %692 = vmatpush1.bf16.msra.mxu0 %v548
      %693 = vmatprep.subr.bf16.mxu0 %v546
      %694 = vmatpush1.bf16.msra.mxu0 %v545
      %695 = vmatprep.subr.bf16.mxu0 %v543
      %696 = vmatpush1.bf16.msra.mxu0 %v542
      %697 = vmatprep.subr.bf16.mxu0 %v540
      %698 = vmatpush1.bf16.msra.mxu0 %v539
      %699 = vmatprep.subr.bf16.mxu0 %v585
      %700 = vmatpush2.bf16.msra.mxu0 %v584
      %701 = vmatprep.subr.bf16.mxu0 %v582
      %702 = vmatpush2.bf16.msra.mxu0 %v581
      %703 = vmatprep.subr.bf16.mxu0 %v579
      %704 = vmatpush2.bf16.msra.mxu0 %v578
      %705 = vmatprep.subr.bf16.mxu0 %v576
      %706 = vmatpush2.bf16.msra.mxu0 %v575
      %707 = vmatprep.subr.bf16.mxu0 %v573
      %708 = vmatpush2.bf16.msra.mxu0 %v572
      %709 = vmatprep.subr.bf16.mxu0 %v570
      %710 = vmatpush2.bf16.msra.mxu0 %v569
      %711 = vmatprep.subr.bf16.mxu0 %v567
      %712 = vmatpush2.bf16.msra.mxu0 %v566
      %713 = vmatprep.subr.bf16.mxu0 %v564
      %714 = vmatpush2.bf16.msra.mxu0 %v563
      %715 = vmatprep.mubr.bf16.mxu0 %v198
      %716 = vmatmul.mubr.bf16.gmra.mxu0 %v197
      %v717 = vpop.f32.mrf.mxu0
      %v718 = vadd.f32 0.0, %v717
      %v719 = vpop.f32.mrf.mxu0
      %v720 = vadd.f32 0.0, %v719
      %v721 = vpop.f32.mrf.mxu0
      %v722 = vadd.f32 0.0, %v721
      %v723 = vpop.f32.mrf.mxu0
      %v724 = vadd.f32 0.0, %v723
      %725 = vmatprep.mubr.bf16.mxu0 %v201
      %726 = vmatmul.mubr.bf16.gmra.mxu0 %v200
      %v727 = vpop.f32.mrf.mxu0
      %v728 = vadd.f32 0.0, %v727
      %v729 = vpop.f32.mrf.mxu0
      %v730 = vadd.f32 0.0, %v729
      %v731 = vpop.f32.mrf.mxu0
      %v732 = vadd.f32 0.0, %v731
      %v733 = vpop.f32.mrf.mxu0
      %v734 = vadd.f32 0.0, %v733
      %735 = vdwg.mxu0
      %736 = vmatprep.subr.bf16.mxu0 %v609
      %737 = vmatpush1.bf16.msra.mxu0 %v608
      %738 = vmatprep.subr.bf16.mxu0 %v606
      %739 = vmatpush1.bf16.msra.mxu0 %v605
      %740 = vmatprep.subr.bf16.mxu0 %v603
      %741 = vmatpush1.bf16.msra.mxu0 %v602
      %742 = vmatprep.subr.bf16.mxu0 %v600
      %743 = vmatpush1.bf16.msra.mxu0 %v599
      %744 = vmatprep.subr.bf16.mxu0 %v597
      %745 = vmatpush1.bf16.msra.mxu0 %v596
      %746 = vmatprep.subr.bf16.mxu0 %v594
      %747 = vmatpush1.bf16.msra.mxu0 %v593
      %748 = vmatprep.subr.bf16.mxu0 %v591
      %749 = vmatpush1.bf16.msra.mxu0 %v590
      %750 = vmatprep.subr.bf16.mxu0 %v588
      %751 = vmatpush1.bf16.msra.mxu0 %v587
      %752 = vmatprep.subr.bf16.mxu0 0
      %753 = vmatpush2.bf16.msra.mxu0 0
      %754 = vmatprep.subr.bf16.mxu0 0
      %755 = vmatpush2.bf16.msra.mxu0 0
      %756 = vmatprep.subr.bf16.mxu0 0
      %757 = vmatpush2.bf16.msra.mxu0 0
      %758 = vmatprep.subr.bf16.mxu0 0
      %759 = vmatpush2.bf16.msra.mxu0 0
      %760 = vmatprep.subr.bf16.mxu0 0
      %761 = vmatpush2.bf16.msra.mxu0 0
      %762 = vmatprep.subr.bf16.mxu0 0
      %763 = vmatpush2.bf16.msra.mxu0 0
      %764 = vmatprep.subr.bf16.mxu0 0
      %765 = vmatpush2.bf16.msra.mxu0 0
      %766 = vmatprep.subr.bf16.mxu0 0
      %767 = vmatpush2.bf16.msra.mxu0 0
      %768 = vmatprep.mubr.bf16.mxu0 0
      %769 = vmatmul.mubr.bf16.gmra.mxu0 %v199
      %v770 = vpop.f32.mrf.mxu0
      %v771 = vadd.f32 %v718, %v770
      %v772 = vpop.f32.mrf.mxu0
      %v773 = vadd.f32 %v720, %v772
      %v774 = vpop.f32.mrf.mxu0
      %v775 = vadd.f32 %v722, %v774
      %v776 = vpop.f32.mrf.mxu0
      %v777 = vadd.f32 %v724, %v776
      %778 = vmatprep.mubr.bf16.mxu0 0
      %779 = vmatmul.mubr.bf16.gmra.mxu0 %v202
      %v780 = vpop.f32.mrf.mxu0
      %v781 = vadd.f32 %v728, %v780
      %v782 = vpop.f32.mrf.mxu0
      %v783 = vadd.f32 %v730, %v782
      %v784 = vpop.f32.mrf.mxu0
      %v785 = vadd.f32 %v732, %v784
      %v786 = vpop.f32.mrf.mxu0
      %v787 = vadd.f32 %v734, %v786
      %788 = vdwg.mxu0
      %789 = vmatprep.subr.bf16.mxu0 0
      %790 = vmatpush1.bf16.msra.mxu0 %v562
      %791 = vmatprep.subr.bf16.mxu0 0
      %792 = vmatpush1.bf16.msra.mxu0 %v559
      %793 = vmatprep.subr.bf16.mxu0 0
      %794 = vmatpush1.bf16.msra.mxu0 %v556
      %795 = vmatprep.subr.bf16.mxu0 0
      %796 = vmatpush1.bf16.msra.mxu0 %v553
      %797 = vmatprep.subr.bf16.mxu0 0
      %798 = vmatpush1.bf16.msra.mxu0 %v550
      %799 = vmatprep.subr.bf16.mxu0 0
      %800 = vmatpush1.bf16.msra.mxu0 %v547
      %801 = vmatprep.subr.bf16.mxu0 0
      %802 = vmatpush1.bf16.msra.mxu0 %v544
      %803 = vmatprep.subr.bf16.mxu0 0
      %804 = vmatpush1.bf16.msra.mxu0 %v541
      %805 = vmatprep.subr.bf16.mxu0 0
      %806 = vmatpush2.bf16.msra.mxu0 %v586
      %807 = vmatprep.subr.bf16.mxu0 0
      %808 = vmatpush2.bf16.msra.mxu0 %v583
      %809 = vmatprep.subr.bf16.mxu0 0
      %810 = vmatpush2.bf16.msra.mxu0 %v580
      %811 = vmatprep.subr.bf16.mxu0 0
      %812 = vmatpush2.bf16.msra.mxu0 %v577
      %813 = vmatprep.subr.bf16.mxu0 0
      %814 = vmatpush2.bf16.msra.mxu0 %v574
      %815 = vmatprep.subr.bf16.mxu0 0
      %816 = vmatpush2.bf16.msra.mxu0 %v571
      %817 = vmatprep.subr.bf16.mxu0 0
      %818 = vmatpush2.bf16.msra.mxu0 %v568
      %819 = vmatprep.subr.bf16.mxu0 0
      %820 = vmatpush2.bf16.msra.mxu0 %v565
      %821 = vmatprep.mubr.bf16.mxu0 %v198
      %822 = vmatmul.mubr.bf16.gmra.mxu0 %v197
      %v823 = vpop.f32.mrf.mxu0
      %v824 = vadd.f32 0.0, %v823
      %v825 = vpop.f32.mrf.mxu0
      %v826 = vpop.f32.mrf.mxu0
      %v827 = vadd.f32 0.0, %v826
      %v828 = vpop.f32.mrf.mxu0
      %829 = vmatprep.mubr.bf16.mxu0 %v201
      %830 = vmatmul.mubr.bf16.gmra.mxu0 %v200
      %v831 = vpop.f32.mrf.mxu0
      %v832 = vadd.f32 0.0, %v831
      %v833 = vpop.f32.mrf.mxu0
      %v834 = vpop.f32.mrf.mxu0
      %v835 = vadd.f32 0.0, %v834
      %v836 = vpop.f32.mrf.mxu0
      %837 = vdwg.mxu0
      %838 = vmatprep.subr.bf16.mxu0 0
      %839 = vmatpush1.bf16.msra.mxu0 %v610
      %840 = vmatprep.subr.bf16.mxu0 0
      %841 = vmatpush1.bf16.msra.mxu0 %v607
      %842 = vmatprep.subr.bf16.mxu0 0
      %843 = vmatpush1.bf16.msra.mxu0 %v604
      %844 = vmatprep.subr.bf16.mxu0 0
      %845 = vmatpush1.bf16.msra.mxu0 %v601
      %846 = vmatprep.subr.bf16.mxu0 0
      %847 = vmatpush1.bf16.msra.mxu0 %v598
      %848 = vmatprep.subr.bf16.mxu0 0
      %849 = vmatpush1.bf16.msra.mxu0 %v595
      %850 = vmatprep.subr.bf16.mxu0 0
      %851 = vmatpush1.bf16.msra.mxu0 %v592
      %852 = vmatprep.subr.bf16.mxu0 0
      %853 = vmatpush1.bf16.msra.mxu0 %v589
      %854 = vmatprep.subr.bf16.mxu0 0
      %855 = vmatpush2.bf16.msra.mxu0 0
      %856 = vmatprep.subr.bf16.mxu0 0
      %857 = vmatpush2.bf16.msra.mxu0 0
      %858 = vmatprep.subr.bf16.mxu0 0
      %859 = vmatpush2.bf16.msra.mxu0 0
      %860 = vmatprep.subr.bf16.mxu0 0
      %861 = vmatpush2.bf16.msra.mxu0 0
      %862 = vmatprep.subr.bf16.mxu0 0
      %863 = vmatpush2.bf16.msra.mxu0 0
      %864 = vmatprep.subr.bf16.mxu0 0
      %865 = vmatpush2.bf16.msra.mxu0 0
      %866 = vmatprep.subr.bf16.mxu0 0
      %867 = vmatpush2.bf16.msra.mxu0 0
      %868 = vmatprep.subr.bf16.mxu0 0
      %869 = vmatpush2.bf16.msra.mxu0 0
      %870 = vmatprep.mubr.bf16.mxu0 0
      %871 = vmatmul.mubr.bf16.gmra.mxu0 %v199
      %v872 = vpop.f32.mrf.mxu0
      %v873 = vadd.f32 %v824, %v872
      %v874 = vpop.f32.mrf.mxu0
      %v875 = vpop.f32.mrf.mxu0
      %v876 = vadd.f32 %v827, %v875
      %v877 = vpop.f32.mrf.mxu0
      %878 = vmatprep.mubr.bf16.mxu0 0
      %879 = vmatmul.mubr.bf16.gmra.mxu0 %v202
      %v880 = vpop.f32.mrf.mxu0
      %v881 = vadd.f32 %v832, %v880
      %v882 = vpop.f32.mrf.mxu0
      %v883 = vpop.f32.mrf.mxu0
      %v884 = vadd.f32 %v835, %v883
      %v885 = vpop.f32.mrf.mxu0
      %886 = vdwg.mxu0
      %v887 = vmax.f32 %v771, 0.0
      %v888 = vmax.f32 %v773, 0.0
      %v889 = vmax.f32 %v873, 0.0
      %v890 = vmax.f32 %v775, 0.0
      %v891 = vmax.f32 %v777, 0.0
      %v892 = vmax.f32 %v876, 0.0
      %v893 = vmax.f32 %v781, 0.0
      %v894 = vmax.f32 %v783, 0.0
      %v895 = vmax.f32 %v881, 0.0
      %v896 = vmax.f32 %v785, 0.0
      %v897 = vmax.f32 %v787, 0.0
      %v898 = vmax.f32 %v884, 0.0
      %v899 = vmin.f32 %v887, 255.0
      %v900 = vmin.f32 %v888, 255.0
      %v901 = vmin.f32 %v889, 255.0
      %v902 = vmin.f32 %v890, 255.0
      %v903 = vmin.f32 %v891, 255.0
      %v904 = vmin.f32 %v892, 255.0
      %v905 = vmin.f32 %v893, 255.0
      %v906 = vmin.f32 %v894, 255.0
      %v907 = vmin.f32 %v895, 255.0
      %v908 = vmin.f32 %v896, 255.0
      %v909 = vmin.f32 %v897, 255.0
      %v910 = vmin.f32 %v898, 255.0
      %v911 = vcvt.f32.s32.to.zero.pseudo %v899
      %v912 = vcvt.f32.s32.to.zero.pseudo %v900
      %v913 = vcvt.f32.s32.to.zero.pseudo %v901
      %v914 = vcvt.f32.s32.to.zero.pseudo %v902
      %v915 = vcvt.f32.s32.to.zero.pseudo %v903
      %v916 = vcvt.f32.s32.to.zero.pseudo %v904
      %v917 = vcvt.f32.s32.to.zero.pseudo %v905
      %v918 = vcvt.f32.s32.to.zero.pseudo %v906
      %v919 = vcvt.f32.s32.to.zero.pseudo %v907
      %v920 = vcvt.f32.s32.to.zero.pseudo %v908
      %v921 = vcvt.f32.s32.to.zero.pseudo %v909
      %v922 = vcvt.f32.s32.to.zero.pseudo %v910
      %v923 = vpack.c.b16 %v912, %v911
      %v924 = vpack.c.b16 %v913, %v913
      %v925 = vpack.c.b8 %v924, %v923
      %v926 = vpack.c.b16 %v915, %v914
      %v927 = vpack.c.b16 %v916, %v916
      %v928 = vpack.c.b8 %v927, %v926
      %v929 = vpack.c.b16 %v918, %v917
      %v930 = vpack.c.b16 %v919, %v919
      %v931 = vpack.c.b8 %v930, %v929
      %v932 = vpack.c.b16 %v921, %v920
      %v933 = vpack.c.b16 %v922, %v922
      %v934 = vpack.c.b8 %v933, %v932
      %935 = vst [vmem:[%s190] sm:$0x3f] %v925
      %936 = vst [vmem:[%s190 + $0x6] sm:$0x3f] %v928
      %937 = vst [vmem:[%s190 + $0xc] sm:$0x3f] %v931
      %938 = vst [vmem:[%s190 + $0x12] sm:$0x3f] %v934
      %s939 = smul.u32 4, %s17
      %s940 = smul.u32 3, %s18
      %p941 = scmp.lt.s32.totalorder %s939, 7
      %s942 = scalar_select %p941, %s939, 7
      %p943 = scmp.lt.s32.totalorder %s940, 2
      %s944 = scalar_select %p943, %s940, 2
      %s945 = smul.addr %s942, 3
      %s946 = sadd.s32 %s944, %s945
      %s947 = smul.addr %s946, 2
      %s948 = scalar_lea.vmem %s2, %s947
      // Predicated region
      $region29: #{branch_1_fun.1} parent=27 // pred_check
        %p949 = pneg %p96
      $region30: #{branch_1_fun.1} parent=27 // pred_check_branch
        %951 = sbr.rel (%p949) target = $region32
      $region31: #{branch_1_fun.1} parent=27 // pred_region
        %s952 = smul.u32 4, %s17
        %s953 = smul.u32 3, %s18
      $region32: #{branch_1_fun.1} parent=27 // pred_fallthru
        _
    $region28: #{branch_1_fun.1} parent=5 // pred_fallthru
      _
    %p954 = scmp.le.s32.totalorder 2, %s8
    // Predicated region
    $region33: #{branch_1_fun.1} parent=5 // pred_check
      %p955 = pneg %p954
    $region34: #{branch_1_fun.1} parent=5 // pred_check_branch
      %957 = sbr.rel (%p955) target = $region36
    $region35: #{branch_1_fun.1} parent=5 // pred_region
      %s958 = ssub.s32 %s8, 2
      // Predicated region
      $region37: #{branch_1_fun.1} parent=35 // pred_check
        %p959 = pneg %p102
      $region38: #{branch_1_fun.1} parent=35 // pred_check_branch
        %961 = sbr.rel (%p959) target = $region40
      $region39: #{branch_1_fun.1} parent=35 // pred_region
        %s962 = smul.u32 4, %s19
        %s963 = smul.u32 3, %s20
        %p964 = scmp.lt.s32.totalorder %s962, 7
        %s965 = scalar_select %p964, %s962, 7
        %p966 = scmp.lt.s32.totalorder %s963, 2
        %s967 = scalar_select %p966, %s963, 2
        %s968 = smul.addr %s965, 3
        %s969 = sadd.s32 %s967, %s968
        %s970 = smul.addr %s969, 2
        %s971 = scalar_lea.vmem %s2, %s970
      $region40: #{branch_1_fun.1} parent=35 // pred_fallthru
        _
    $region36: #{branch_1_fun.1} parent=5 // pred_fallthru
      _
  $region6: #{branch_1_fun.1} parent=0 // loop_footer
    %s12 = sadd.s32 1, %s8
  $region7: #{branch_1_fun.1} parent=0 // loop_footer_branch
    %7 = sbr.rel target = $region3
  $region8: #{branch_1_fun.1} parent=0 // loop_exit
    _

</llo_original>
